<compile_context>
chip_gen: v7x
topology: tpu7x:2x2x1
jax: 0.10.0
libtpu: 0.0.40
codegen_flags: <defaults>
</compile_context>

<pallas_src>
import jax
import jax.numpy as jnp
from jax.experimental import pallas as pl
from jax.experimental.pallas import tpu as pltpu


# ----------------------------------------------------------------------------
# Kernel
# ----------------------------------------------------------------------------
def _double_conv_kernel(x_ref, b1_ref, b2_ref, bn_ref, o_ref, xrow_ref, hrow_ref):
    """Fused (conv3x3 + BN + ReLU) x 2 for B_blk batch images per grid step.

    x_ref    : (B_blk, H, W*Cin)        input images, lane-packed (w, ci)
    b1_ref   : (3, W*Cin,  W*Cout)      stage-1 banded conv weights (per dy)
    b2_ref   : (3, W*Cout, W*Cout)      stage-2 banded conv weights (per dy)
    bn_ref   : (4, W*Cout)  f32         rows: scale1, bias1, scale2, bias2
    o_ref    : (B_blk, H, W*Cout)       output, lane-dense
    xrow_ref : (B_blk*(H+2), W*Cin)     VMEM: row-padded stage-1 input
    hrow_ref : (B_blk*(H+2), W*Cout)    VMEM: row-padded stage-1 activation
                                        (never touches HBM)
    """
    B, H, WCout = o_ref.shape
    WCin = x_ref.shape[2]
    S = H + 2                 # padded row stride per image slot
    M = B * S                 # total scratch rows
    cdt = xrow_ref.dtype

    def _zero_halos(ref, width):
        # Rows b*S and b*S+H+1 of every image slot must be zero before the
        # banded matmuls read them (adjacent internal halos fused into one
        # 2-row store).  Re-done every step: VMEM scratch is per-core and a
        # "parallel" grid axis may start a v7x core at program_id != 0, so an
        # init-once pl.when(program_id == 0) guard would be unsafe.
        z1 = jnp.zeros((1, width), ref.dtype)
        ref[0:1, :] = z1
        ref[M - 1:M, :] = z1
        for b in range(B - 1):
            ref[b * S + H + 1: b * S + H + 3, :] = jnp.zeros((2, width), ref.dtype)

    # ---------------- stage 1: conv1 + BN1 + ReLU ----------------
    # padding=1 along H is done via the zero halo rows; padding along W is
    # encoded in the banded weight matrices.
    _zero_halos(xrow_ref, WCin)
    for b in range(B):                                   # static loop, B small
        xrow_ref[b * S + 1: b * S + 1 + H, :] = x_ref[b].astype(cdt)

    acc = jnp.dot(xrow_ref[0:M - 2, :], b1_ref[0],
                  preferred_element_type=jnp.float32)
    acc = acc + jnp.dot(xrow_ref[1:M - 1, :], b1_ref[1],
                        preferred_element_type=jnp.float32)
    acc = acc + jnp.dot(xrow_ref[2:M, :], b1_ref[2],
                        preferred_element_type=jnp.float32)
    y1 = jnp.maximum(acc * bn_ref[0] + bn_ref[1], 0.0)   # f32 epilogue

    # ---------------- stage 2: conv2 + BN2 + ReLU ----------------
    # Only the valid rows of each image are copied into hrow; the rows of y1
    # centered on halo rows (inter-image garbage) are simply discarded, so the
    # internal halo rows of hrow stay zero.
    _zero_halos(hrow_ref, WCout)
    for b in range(B):
        hrow_ref[b * S + 1: b * S + 1 + H, :] = y1[b * S: b * S + H, :].astype(cdt)

    acc2 = jnp.dot(hrow_ref[0:M - 2, :], b2_ref[0],
                   preferred_element_type=jnp.float32)
    acc2 = acc2 + jnp.dot(hrow_ref[1:M - 1, :], b2_ref[1],
                          preferred_element_type=jnp.float32)
    acc2 = acc2 + jnp.dot(hrow_ref[2:M, :], b2_ref[2],
                          preferred_element_type=jnp.float32)
    y2 = jnp.maximum(acc2 * bn_ref[2] + bn_ref[3], 0.0).astype(o_ref.dtype)

    for b in range(B):
        o_ref[b] = y2[b * S: b * S + H, :]


# ----------------------------------------------------------------------------
# One-time weight / BN pre-layout (hoisted out of the forward pass)
# ----------------------------------------------------------------------------
def _band_weights(w_hwio, W):
    """Lower a 3x3 HWIO conv along W into banded matrices B[dy]:(W*Cin, W*Cout).

    B[dy, win*Cin + ci, w*Cout + co] = w[dy, dx, ci, co] where win = w + dx - 1
    (out-of-range taps dropped => zero padding along W).
    """
    kh, kw, cin, cout = w_hwio.shape
    pad = kw // 2
    bands = []
    for dy in range(kh):
        bdy = sum(
            jnp.kron(jnp.eye(W, k=pad - dx, dtype=w_hwio.dtype), w_hwio[dy, dx])
            for dx in range(kw)
        )
        bands.append(bdy)
    return jnp.stack(bands)  # (kh, W*cin, W*cout)


def _fold_bn(conv_bias, gamma, beta, running_mean, running_var, eps=1e-5):
    inv_std = 1.0 / jnp.sqrt(running_var + eps)
    scale = gamma * inv_std
    bias = beta + scale * (conv_bias - running_mean)
    return scale, bias


def prepare_double_conv(params, W, compute_dtype=jnp.bfloat16):
    """Build the kernel operands ONCE per parameter set.

    Returns (B1, B2, bn) ready to be passed to double_conv_apply_nhwc.
    Hoisting this out of the per-call wrapper removes the per-forward
    re-construction (and HBM re-materialization) of the W^2-inflated banded
    weights that the previous version paid under jit.
    """
    s1, t1 = _fold_bn(params["b1"], params["g1"], params["beta1"],
                      params["mean1"], params["var1"])
    s2, t2 = _fold_bn(params["b2"], params["g2"], params["beta2"],
                      params["mean2"], params["var2"])
    bn = jnp.stack([jnp.tile(s1, W), jnp.tile(t1, W),
                    jnp.tile(s2, W), jnp.tile(t2, W)]).astype(jnp.float32)
    B1 = _band_weights(params["w1"], W).astype(compute_dtype)  # (3, W*Cin,  W*Cout)
    B2 = _band_weights(params["w2"], W).astype(compute_dtype)  # (3, W*Cout, W*Cout)
    return B1, B2, bn


# ----------------------------------------------------------------------------
# Forward
# ----------------------------------------------------------------------------
def _pick_b_blk(N, H):
    # Fill the MXU M dimension: target ~256 padded rows per grid step (M=16
    # rows fills <7% of a v6e/v7x 256-wide MXU tile and cannot amortize the
    # per-dot RHS weight push).  Keep B_blk an exact divisor of N so every
    # block is full.  (On v7x one may prefer a smaller B_blk that keeps the
    # parallel grid axis >= 2 so both TensorCores get work -- pass b_blk
    # explicitly for that.)
    target = max(1, 256 // (H + 2))
    b = min(N, target)
    while N % b:
        b -= 1
    return b


def double_conv_apply_nhwc(x_nhwc, B1, B2, bn, *, b_blk=None):
    """x_nhwc: (N, H, W, Cin) -> (N, H, W, Cout). One fused pallas_call."""
    N, H, W, Cin = x_nhwc.shape
    WCin = W * Cin
    WCout = B1.shape[2]
    Cout = WCout // W
    compute_dtype = B1.dtype
    assert B1.shape == (3, WCin, WCout) and B2.shape == (3, WCout, WCout)

    if b_blk is None:
        b_blk = _pick_b_blk(N, H)
    assert N % b_blk == 0
    G = N // b_blk
    M = b_blk * (H + 2)

    # Lane-pack the input: (N, H, W, Cin) -> (N, H, W*Cin)  (free reshape).
    x2d = x_nhwc.reshape(N, H, WCin).astype(compute_dtype)

    itemsize = jnp.dtype(compute_dtype).itemsize
    rows = M - 2
    flops = 2 * G * 3 * rows * (WCin * WCout + WCout * WCout)
    bytes_accessed = int(N * H * WCin * itemsize              # input
                         + (B1.size + B2.size) * itemsize     # weights
                         + bn.size * 4                        # BN params
                         + N * H * WCout * itemsize)          # output

    out2d = pl.pallas_call(
        _double_conv_kernel,
        out_shape=jax.ShapeDtypeStruct((N, H, WCout), compute_dtype),
        grid_spec=pltpu.PrefetchScalarGridSpec(
            num_scalar_prefetch=0,
            grid=(G,),
            in_specs=[
                pl.BlockSpec((b_blk, H, WCin), lambda n: (n, 0, 0)),
                pl.BlockSpec((3, WCin, WCout), lambda n: (0, 0, 0)),
                pl.BlockSpec((3, WCout, WCout), lambda n: (0, 0, 0)),
                pl.BlockSpec((4, WCout), lambda n: (0, 0)),
            ],
            out_specs=pl.BlockSpec((b_blk, H, WCout), lambda n: (n, 0, 0)),
            scratch_shapes=[
                pltpu.VMEM((M, WCin), compute_dtype),
                pltpu.VMEM((M, WCout), compute_dtype),
            ],
        ),
        compiler_params=pltpu.CompilerParams(
            dimension_semantics=("parallel",),
            vmem_limit_bytes=32 * 1024 * 1024,
        ),
        cost_estimate=pl.CostEstimate(
            flops=flops, transcendentals=0, bytes_accessed=bytes_accessed),
    )(x2d, B1, B2, bn)

    return out2d.reshape(N, H, W, Cout)


def double_conv_forward_nchw(x_nchw, B1, B2, bn, *, b_blk=None):
    """PyTorch-layout (NCHW) compatibility wrapper.

    Each transpose is a separate XLA HBM round trip -- in a real UNet keep the
    whole network NHWC and call double_conv_apply_nhwc directly.
    """
    x = jnp.transpose(x_nchw, (0, 2, 3, 1))              # NCHW -> NHWC
    y = double_conv_apply_nhwc(x, B1, B2, bn, b_blk=b_blk)
    return jnp.transpose(y, (0, 3, 1, 2))                # NHWC -> NCHW


# ----------------------------------------------------------------------------
# Params + pure-JAX reference
# ----------------------------------------------------------------------------
def init_double_conv_params(key, in_ch, out_ch):
    ks = jax.random.split(key, 10)
    p = {}
    p["w1"] = 0.1 * jax.random.normal(ks[0], (3, 3, in_ch, out_ch), jnp.float32)
    p["b1"] = 0.1 * jax.random.normal(ks[1], (out_ch,), jnp.float32)
    p["g1"] = 1.0 + 0.1 * jax.random.normal(ks[2], (out_ch,), jnp.float32)
    p["beta1"] = 0.1 * jax.random.normal(ks[3], (out_ch,), jnp.float32)
    p["mean1"] = 0.05 * jax.random.normal(ks[4], (out_ch,), jnp.float32)
    p["var1"] = 1.0 + 0.2 * jax.random.uniform(ks[5], (out_ch,), jnp.float32)

    p["w2"] = 0.1 * jax.random.normal(ks[6], (3, 3, out_ch, out_ch), jnp.float32)
    p["b2"] = 0.1 * jax.random.normal(ks[7], (out_ch,), jnp.float32)
    p["g2"] = 1.0 + 0.1 * jax.random.normal(ks[8], (out_ch,), jnp.float32)
    p["beta2"] = 0.1 * jax.random.normal(ks[9], (out_ch,), jnp.float32)
    p["mean2"] = jnp.zeros((out_ch,), jnp.float32)
    p["var2"] = jnp.ones((out_ch,), jnp.float32)
    return p


def _reference_forward(x_nchw, params):
    """Pure-JAX reference (lax conv) for correctness checking."""
    x = jnp.transpose(x_nchw, (0, 2, 3, 1))

    def block(x, w, b, g, beta, mean, var):
        y = jax.lax.conv_general_dilated(
            x, w, window_strides=(1, 1), padding="SAME",
            dimension_numbers=("NHWC", "HWIO", "NHWC"))
        y = y + b
        y = g * (y - mean) / jnp.sqrt(var + 1e-5) + beta
        return jnp.maximum(y, 0.0)

    y = block(x, params["w1"], params["b1"], params["g1"], params["beta1"],
              params["mean1"], params["var1"])
    y = block(y, params["w2"], params["b2"], params["g2"], params["beta2"],
              params["mean2"], params["var2"])
    return jnp.transpose(y, (0, 3, 1, 2))


if __name__ == "__main__":
    key = jax.random.PRNGKey(0)
    k_x, k_p = jax.random.split(key)

    N, C_IN, C_OUT, H, W = 2, 4, 8, 16, 16
    x = jax.random.normal(k_x, (N, C_IN, H, W), jnp.float32)
    params = init_double_conv_params(k_p, C_IN, C_OUT)

    ref = _reference_forward(x, params)

    fwd = jax.jit(double_conv_forward_nchw)

    # f32 MXU operands + f32 output: strict comparison against the f32 reference.
    prep_f32 = prepare_double_conv(params, W, compute_dtype=jnp.float32)
    out_f32 = jax.block_until_ready(fwd(x, *prep_f32))
    assert out_f32.shape == (N, C_OUT, H, W)
    assert out_f32.dtype == jnp.float32
    assert jnp.allclose(out_f32, ref, atol=1e-4, rtol=1e-4), "f32 mismatch vs reference"

    # bf16 fast path (default): bf16 MXU operands + bf16 output store, with f32
    # accumulation and f32 BN/ReLU epilogue inside the kernel.
    prep_bf16 = prepare_double_conv(params, W, compute_dtype=jnp.bfloat16)
    out_bf16 = jax.block_until_ready(fwd(x, *prep_bf16))
    assert out_bf16.shape == (N, C_OUT, H, W)
    assert out_bf16.dtype == jnp.bfloat16
    assert jnp.allclose(out_bf16.astype(jnp.float32), ref, atol=5e-2, rtol=5e-2), \
        "bf16 mismatch vs reference"

    print("KERNEL_OK")
</pallas_src>

<mosaic_0001>
module attributes {stable_mosaic.version = 11 : i64} {
  func.func @_double_conv_kernel(%arg0: i32, %arg1: memref<2x16x64xf32, #tpu.memory_space<vmem>>, %arg2: memref<3x64x128xf32, #tpu.memory_space<vmem>>, %arg3: memref<3x128x128xf32, #tpu.memory_space<vmem>>, %arg4: memref<4x128xf32, #tpu.memory_space<vmem>>, %arg5: memref<2x16x128xf32, #tpu.memory_space<vmem>>, %arg6: memref<36x64xf32, #tpu.memory_space<vmem>>, %arg7: memref<36x128xf32, #tpu.memory_space<vmem>>) attributes {dimension_semantics = [#tpu.dimension_semantics<parallel>], iteration_bounds = array<i64: 1>, scalar_prefetch = 0 : i64, scratch_operands = 2 : i64, tpu.core_type = #tpu.core_type<tc>, window_params = [{transform_indices = @transform_0, window_bounds = array<i64: 2, 16, 64>}, {pipeline_mode = #tpu.pipeline_mode<synchronous>, transform_indices = @transform_1, window_bounds = array<i64: 3, 64, 128>}, {pipeline_mode = #tpu.pipeline_mode<synchronous>, transform_indices = @transform_2, window_bounds = array<i64: 3, 128, 128>}, {pipeline_mode = #tpu.pipeline_mode<synchronous>, transform_indices = @transform_3, window_bounds = array<i64: 4, 128>}, {transform_indices = @transform_4, window_bounds = array<i64: 2, 16, 128>}]} {
    %cst = arith.constant 0.000000e+00 : f32
    %0 = vector.broadcast %cst : f32 to vector<1x64xf32>
    %c0 = arith.constant 0 : index
    %c0_0 = arith.constant 0 : index
    %1 = vector.load %arg6[%c0, %c0_0] : memref<36x64xf32, #tpu.memory_space<vmem>>, vector<1x64xf32>
    tpu.vector_store %arg6[%c0, %c0_0], %0 {strides = array<i32>} : memref<36x64xf32, #tpu.memory_space<vmem>>, vector<1x64xf32>,
    %c35 = arith.constant 35 : index
    %c0_1 = arith.constant 0 : index
    %2 = vector.load %arg6[%c35, %c0_1] : memref<36x64xf32, #tpu.memory_space<vmem>>, vector<1x64xf32>
    tpu.vector_store %arg6[%c35, %c0_1], %0 {strides = array<i32>} : memref<36x64xf32, #tpu.memory_space<vmem>>, vector<1x64xf32>,
    %cst_2 = arith.constant 0.000000e+00 : f32
    %3 = vector.broadcast %cst_2 : f32 to vector<2x64xf32>
    %c17 = arith.constant 17 : index
    %c0_3 = arith.constant 0 : index
    %4 = vector.load %arg6[%c17, %c0_3] : memref<36x64xf32, #tpu.memory_space<vmem>>, vector<2x64xf32>
    tpu.vector_store %arg6[%c17, %c0_3], %3 {strides = array<i32>} : memref<36x64xf32, #tpu.memory_space<vmem>>, vector<2x64xf32>,
    %c0_4 = arith.constant 0 : index
    %c0_5 = arith.constant 0 : index
    %c0_6 = arith.constant 0 : index
    %5 = vector.load %arg1[%c0_4, %c0_5, %c0_6] : memref<2x16x64xf32, #tpu.memory_space<vmem>>, vector<1x16x64xf32>
    %6 = vector.shape_cast %5 : vector<1x16x64xf32> to vector<16x64xf32>
    %c1 = arith.constant 1 : index
    %c0_7 = arith.constant 0 : index
    %7 = vector.load %arg6[%c1, %c0_7] : memref<36x64xf32, #tpu.memory_space<vmem>>, vector<16x64xf32>
    tpu.vector_store %arg6[%c1, %c0_7], %6 {strides = array<i32>} : memref<36x64xf32, #tpu.memory_space<vmem>>, vector<16x64xf32>,
    %c1_8 = arith.constant 1 : index
    %c0_9 = arith.constant 0 : index
    %c0_10 = arith.constant 0 : index
    %8 = vector.load %arg1[%c1_8, %c0_9, %c0_10] : memref<2x16x64xf32, #tpu.memory_space<vmem>>, vector<1x16x64xf32>
    %9 = vector.shape_cast %8 : vector<1x16x64xf32> to vector<16x64xf32>
    %c19 = arith.constant 19 : index
    %c0_11 = arith.constant 0 : index
    %10 = vector.load %arg6[%c19, %c0_11] : memref<36x64xf32, #tpu.memory_space<vmem>>, vector<16x64xf32>
    tpu.vector_store %arg6[%c19, %c0_11], %9 {strides = array<i32>} : memref<36x64xf32, #tpu.memory_space<vmem>>, vector<16x64xf32>,
    %c0_12 = arith.constant 0 : index
    %c0_13 = arith.constant 0 : index
    %11 = vector.load %arg6[%c0_12, %c0_13] : memref<36x64xf32, #tpu.memory_space<vmem>>, vector<34x64xf32>
    %c0_14 = arith.constant 0 : index
    %c0_15 = arith.constant 0 : index
    %c0_16 = arith.constant 0 : index
    %12 = vector.load %arg2[%c0_14, %c0_15, %c0_16] : memref<3x64x128xf32, #tpu.memory_space<vmem>>, vector<1x64x128xf32>
    %13 = vector.shape_cast %12 : vector<1x64x128xf32> to vector<64x128xf32>
    %cst_17 = arith.constant dense<0.000000e+00> : vector<34x128xf32>
    %14 = tpu.matmul %11, %13, %cst_17 {dimension_numbers = #tpu.dot_dimension_numbers<[1], [0], [0], [1], [0, 0, 1, 1], [], []>} : vector<34x64xf32>, vector<64x128xf32>, vector<34x128xf32> -> vector<34x128xf32>
    %c1_18 = arith.constant 1 : index
    %c0_19 = arith.constant 0 : index
    %15 = vector.load %arg6[%c1_18, %c0_19] : memref<36x64xf32, #tpu.memory_space<vmem>>, vector<34x64xf32>
    %c1_20 = arith.constant 1 : index
    %c0_21 = arith.constant 0 : index
    %c0_22 = arith.constant 0 : index
    %16 = vector.load %arg2[%c1_20, %c0_21, %c0_22] : memref<3x64x128xf32, #tpu.memory_space<vmem>>, vector<1x64x128xf32>
    %17 = vector.shape_cast %16 : vector<1x64x128xf32> to vector<64x128xf32>
    %cst_23 = arith.constant dense<0.000000e+00> : vector<34x128xf32>
    %18 = tpu.matmul %15, %17, %cst_23 {dimension_numbers = #tpu.dot_dimension_numbers<[1], [0], [0], [1], [0, 0, 1, 1], [], []>} : vector<34x64xf32>, vector<64x128xf32>, vector<34x128xf32> -> vector<34x128xf32>
    %19 = arith.addf %14, %18 : vector<34x128xf32>
    %c2 = arith.constant 2 : index
    %c0_24 = arith.constant 0 : index
    %20 = vector.load %arg6[%c2, %c0_24] : memref<36x64xf32, #tpu.memory_space<vmem>>, vector<34x64xf32>
    %c2_25 = arith.constant 2 : index
    %c0_26 = arith.constant 0 : index
    %c0_27 = arith.constant 0 : index
    %21 = vector.load %arg2[%c2_25, %c0_26, %c0_27] : memref<3x64x128xf32, #tpu.memory_space<vmem>>, vector<1x64x128xf32>
    %22 = vector.shape_cast %21 : vector<1x64x128xf32> to vector<64x128xf32>
    %cst_28 = arith.constant dense<0.000000e+00> : vector<34x128xf32>
    %23 = tpu.matmul %20, %22, %cst_28 {dimension_numbers = #tpu.dot_dimension_numbers<[1], [0], [0], [1], [0, 0, 1, 1], [], []>} : vector<34x64xf32>, vector<64x128xf32>, vector<34x128xf32> -> vector<34x128xf32>
    %24 = arith.addf %19, %23 : vector<34x128xf32>
    %c0_29 = arith.constant 0 : index
    %c0_30 = arith.constant 0 : index
    %25 = vector.load %arg4[%c0_29, %c0_30] : memref<4x128xf32, #tpu.memory_space<vmem>>, vector<1x128xf32>
    %26 = vector.shape_cast %25 : vector<1x128xf32> to vector<128xf32>
    %27 = vector.shape_cast %26 : vector<128xf32> to vector<1x128xf32>
    %28 = vector.broadcast %27 : vector<1x128xf32> to vector<34x128xf32>
    %29 = arith.mulf %24, %28 : vector<34x128xf32>
    %c1_31 = arith.constant 1 : index
    %c0_32 = arith.constant 0 : index
    %30 = vector.load %arg4[%c1_31, %c0_32] : memref<4x128xf32, #tpu.memory_space<vmem>>, vector<1x128xf32>
    %31 = vector.shape_cast %30 : vector<1x128xf32> to vector<128xf32>
    %32 = vector.shape_cast %31 : vector<128xf32> to vector<1x128xf32>
    %33 = vector.broadcast %32 : vector<1x128xf32> to vector<34x128xf32>
    %34 = arith.addf %29, %33 : vector<34x128xf32>
    %cst_33 = arith.constant 0.000000e+00 : f32
    %35 = vector.broadcast %cst_33 : f32 to vector<34x128xf32>
    %36 = arith.maximumf %34, %35 : vector<34x128xf32>
    %cst_34 = arith.constant 0.000000e+00 : f32
    %37 = vector.broadcast %cst_34 : f32 to vector<1x128xf32>
    %c0_35 = arith.constant 0 : index
    %c0_36 = arith.constant 0 : index
    %38 = vector.load %arg7[%c0_35, %c0_36] : memref<36x128xf32, #tpu.memory_space<vmem>>, vector<1x128xf32>
    tpu.vector_store %arg7[%c0_35, %c0_36], %37 {strides = array<i32>} : memref<36x128xf32, #tpu.memory_space<vmem>>, vector<1x128xf32>,
    %c35_37 = arith.constant 35 : index
    %c0_38 = arith.constant 0 : index
    %39 = vector.load %arg7[%c35_37, %c0_38] : memref<36x128xf32, #tpu.memory_space<vmem>>, vector<1x128xf32>
    tpu.vector_store %arg7[%c35_37, %c0_38], %37 {strides = array<i32>} : memref<36x128xf32, #tpu.memory_space<vmem>>, vector<1x128xf32>,
    %cst_39 = arith.constant 0.000000e+00 : f32
    %40 = vector.broadcast %cst_39 : f32 to vector<2x128xf32>
    %c17_40 = arith.constant 17 : index
    %c0_41 = arith.constant 0 : index
    %41 = vector.load %arg7[%c17_40, %c0_41] : memref<36x128xf32, #tpu.memory_space<vmem>>, vector<2x128xf32>
    tpu.vector_store %arg7[%c17_40, %c0_41], %40 {strides = array<i32>} : memref<36x128xf32, #tpu.memory_space<vmem>>, vector<2x128xf32>,
    %42 = vector.extract_strided_slice %36 {offsets = [0, 0], sizes = [16, 128], strides = [1, 1]} : vector<34x128xf32> to vector<16x128xf32>
    %c1_42 = arith.constant 1 : index
    %c0_43 = arith.constant 0 : index
    %43 = vector.load %arg7[%c1_42, %c0_43] : memref<36x128xf32, #tpu.memory_space<vmem>>, vector<16x128xf32>
    tpu.vector_store %arg7[%c1_42, %c0_43], %42 {strides = array<i32>} : memref<36x128xf32, #tpu.memory_space<vmem>>, vector<16x128xf32>,
    %44 = vector.extract_strided_slice %36 {offsets = [18, 0], sizes = [16, 128], strides = [1, 1]} : vector<34x128xf32> to vector<16x128xf32>
    %c19_44 = arith.constant 19 : index
    %c0_45 = arith.constant 0 : index
    %45 = vector.load %arg7[%c19_44, %c0_45] : memref<36x128xf32, #tpu.memory_space<vmem>>, vector<16x128xf32>
    tpu.vector_store %arg7[%c19_44, %c0_45], %44 {strides = array<i32>} : memref<36x128xf32, #tpu.memory_space<vmem>>, vector<16x128xf32>,
    %c0_46 = arith.constant 0 : index
    %c0_47 = arith.constant 0 : index
    %46 = vector.load %arg7[%c0_46, %c0_47] : memref<36x128xf32, #tpu.memory_space<vmem>>, vector<34x128xf32>
    %c0_48 = arith.constant 0 : index
    %c0_49 = arith.constant 0 : index
    %c0_50 = arith.constant 0 : index
    %47 = vector.load %arg3[%c0_48, %c0_49, %c0_50] : memref<3x128x128xf32, #tpu.memory_space<vmem>>, vector<1x128x128xf32>
    %48 = vector.shape_cast %47 : vector<1x128x128xf32> to vector<128x128xf32>
    %cst_51 = arith.constant dense<0.000000e+00> : vector<34x128xf32>
    %49 = tpu.matmul %46, %48, %cst_51 {dimension_numbers = #tpu.dot_dimension_numbers<[1], [0], [0], [1], [0, 0, 1, 1], [], []>} : vector<34x128xf32>, vector<128x128xf32>, vector<34x128xf32> -> vector<34x128xf32>
    %c1_52 = arith.constant 1 : index
    %c0_53 = arith.constant 0 : index
    %50 = vector.load %arg7[%c1_52, %c0_53] : memref<36x128xf32, #tpu.memory_space<vmem>>, vector<34x128xf32>
    %c1_54 = arith.constant 1 : index
    %c0_55 = arith.constant 0 : index
    %c0_56 = arith.constant 0 : index
    %51 = vector.load %arg3[%c1_54, %c0_55, %c0_56] : memref<3x128x128xf32, #tpu.memory_space<vmem>>, vector<1x128x128xf32>
    %52 = vector.shape_cast %51 : vector<1x128x128xf32> to vector<128x128xf32>
    %cst_57 = arith.constant dense<0.000000e+00> : vector<34x128xf32>
    %53 = tpu.matmul %50, %52, %cst_57 {dimension_numbers = #tpu.dot_dimension_numbers<[1], [0], [0], [1], [0, 0, 1, 1], [], []>} : vector<34x128xf32>, vector<128x128xf32>, vector<34x128xf32> -> vector<34x128xf32>
    %54 = arith.addf %49, %53 : vector<34x128xf32>
    %c2_58 = arith.constant 2 : index
    %c0_59 = arith.constant 0 : index
    %55 = vector.load %arg7[%c2_58, %c0_59] : memref<36x128xf32, #tpu.memory_space<vmem>>, vector<34x128xf32>
    %c2_60 = arith.constant 2 : index
    %c0_61 = arith.constant 0 : index
    %c0_62 = arith.constant 0 : index
    %56 = vector.load %arg3[%c2_60, %c0_61, %c0_62] : memref<3x128x128xf32, #tpu.memory_space<vmem>>, vector<1x128x128xf32>
    %57 = vector.shape_cast %56 : vector<1x128x128xf32> to vector<128x128xf32>
    %cst_63 = arith.constant dense<0.000000e+00> : vector<34x128xf32>
    %58 = tpu.matmul %55, %57, %cst_63 {dimension_numbers = #tpu.dot_dimension_numbers<[1], [0], [0], [1], [0, 0, 1, 1], [], []>} : vector<34x128xf32>, vector<128x128xf32>, vector<34x128xf32> -> vector<34x128xf32>
    %59 = arith.addf %54, %58 : vector<34x128xf32>
    %c2_64 = arith.constant 2 : index
    %c0_65 = arith.constant 0 : index
    %60 = vector.load %arg4[%c2_64, %c0_65] : memref<4x128xf32, #tpu.memory_space<vmem>>, vector<1x128xf32>
    %61 = vector.shape_cast %60 : vector<1x128xf32> to vector<128xf32>
    %62 = vector.shape_cast %61 : vector<128xf32> to vector<1x128xf32>
    %63 = vector.broadcast %62 : vector<1x128xf32> to vector<34x128xf32>
    %64 = arith.mulf %59, %63 : vector<34x128xf32>
    %c3 = arith.constant 3 : index
    %c0_66 = arith.constant 0 : index
    %65 = vector.load %arg4[%c3, %c0_66] : memref<4x128xf32, #tpu.memory_space<vmem>>, vector<1x128xf32>
    %66 = vector.shape_cast %65 : vector<1x128xf32> to vector<128xf32>
    %67 = vector.shape_cast %66 : vector<128xf32> to vector<1x128xf32>
    %68 = vector.broadcast %67 : vector<1x128xf32> to vector<34x128xf32>
    %69 = arith.addf %64, %68 : vector<34x128xf32>
    %cst_67 = arith.constant 0.000000e+00 : f32
    %70 = vector.broadcast %cst_67 : f32 to vector<34x128xf32>
    %71 = arith.maximumf %69, %70 : vector<34x128xf32>
    %72 = vector.extract_strided_slice %71 {offsets = [0, 0], sizes = [16, 128], strides = [1, 1]} : vector<34x128xf32> to vector<16x128xf32>
    %c0_68 = arith.constant 0 : index
    %c0_69 = arith.constant 0 : index
    %c0_70 = arith.constant 0 : index
    %73 = vector.load %arg5[%c0_68, %c0_69, %c0_70] : memref<2x16x128xf32, #tpu.memory_space<vmem>>, vector<1x16x128xf32>
    %74 = vector.shape_cast %73 : vector<1x16x128xf32> to vector<16x128xf32>
    %75 = vector.shape_cast %72 : vector<16x128xf32> to vector<1x16x128xf32>
    tpu.vector_store %arg5[%c0_68, %c0_69, %c0_70], %75 {strides = array<i32>} : memref<2x16x128xf32, #tpu.memory_space<vmem>>, vector<1x16x128xf32>,
    %76 = vector.extract_strided_slice %71 {offsets = [18, 0], sizes = [16, 128], strides = [1, 1]} : vector<34x128xf32> to vector<16x128xf32>
    %c1_71 = arith.constant 1 : index
    %c0_72 = arith.constant 0 : index
    %c0_73 = arith.constant 0 : index
    %77 = vector.load %arg5[%c1_71, %c0_72, %c0_73] : memref<2x16x128xf32, #tpu.memory_space<vmem>>, vector<1x16x128xf32>
    %78 = vector.shape_cast %77 : vector<1x16x128xf32> to vector<16x128xf32>
    %79 = vector.shape_cast %76 : vector<16x128xf32> to vector<1x16x128xf32>
    tpu.vector_store %arg5[%c1_71, %c0_72, %c0_73], %79 {strides = array<i32>} : memref<2x16x128xf32, #tpu.memory_space<vmem>>, vector<1x16x128xf32>,
    return
  }
  func.func @transform_0(%arg0: i32) -> (i32, i32, i32) {
    %c0_i32 = arith.constant 0 : i32
    %c0_i32_0 = arith.constant 0 : i32
    %c0_i32_1 = arith.constant 0 : i32
    return %arg0, %c0_i32, %c0_i32_0 : i32, i32, i32
  }
  func.func @transform_1(%arg0: i32) -> (i32, i32, i32) {
    %c0_i32 = arith.constant 0 : i32
    %c0_i32_0 = arith.constant 0 : i32
    %c0_i32_1 = arith.constant 0 : i32
    %c0_i32_2 = arith.constant 0 : i32
    return %c0_i32, %c0_i32_0, %c0_i32_1 : i32, i32, i32
  }
  func.func @transform_2(%arg0: i32) -> (i32, i32, i32) {
    %c0_i32 = arith.constant 0 : i32
    %c0_i32_0 = arith.constant 0 : i32
    %c0_i32_1 = arith.constant 0 : i32
    %c0_i32_2 = arith.constant 0 : i32
    return %c0_i32, %c0_i32_0, %c0_i32_1 : i32, i32, i32
  }
  func.func @transform_3(%arg0: i32) -> (i32, i32) {
    %c0_i32 = arith.constant 0 : i32
    %c0_i32_0 = arith.constant 0 : i32
    %c0_i32_1 = arith.constant 0 : i32
    return %c0_i32, %c0_i32_0 : i32, i32
  }
  func.func @transform_4(%arg0: i32) -> (i32, i32, i32) {
    %c0_i32 = arith.constant 0 : i32
    %c0_i32_0 = arith.constant 0 : i32
    %c0_i32_1 = arith.constant 0 : i32
    return %arg0, %c0_i32, %c0_i32_0 : i32, i32, i32
  }
}

</mosaic_0001>

<llo_original>
// kernel: double_conv_forward_nchw.1
$region0: #{double_conv_forward_nchw.1}
  #allocation0 [shape = 'u32[]', space=smem, size = 0x4, offset = 0x4, fixed_abs, tag = 'smem constant byte address 0x4 - core index']
  #allocation1 [shape = 'u32[144,128]{1,0:T(1,128)}', space=vmem, size = 0x12000, scoped, tag = 'internal scratch']
  #allocation2 [shape = 'f32[36,64]{1,0:T(8,128)}', space=vmem, size = 0x5000, scoped, tag = 'scratch operand']
  #allocation3 [shape = 'f32[36,128]{1,0:T(8,128)}', space=vmem, size = 0x5000, scoped, tag = 'scratch operand']
  %s0 = inlined_call_operand.vmem [shape: f32[2,16,64], index: 0, kind: input, shape index: {}]
  %s1 = inlined_call_operand.hbm [shape: f32[3,64,128], index: 1, kind: input, shape index: {}]
  %s2 = inlined_call_operand.vmem [shape: f32[3,128,128], index: 2, kind: input, shape index: {}]
  %s3 = inlined_call_operand.vmem [shape: f32[4,128], index: 3, kind: input, shape index: {}]
  %s4 = inlined_call_operand.vmem [shape: f32[2,16,128], index: 4, kind: output, shape index: {}]
  %s5 = sld [smem:[#allocation0]]
  $region30: #{double_conv_forward_nchw.1} parent=0
    _
  %s7 = ssub.s32 1, %s5
  %s8 = scalar_select 0, %s7, %s5
  $region1: #{double_conv_forward_nchw.1} parent=0
    #allocation4 [shape = 'u8[98304]{0}', space=vmem, size = 0x18000, scoped, tag = 'input window, operand 1, single buffered']
    #allocation5 [shape = 's32[1]{0}', space=sflag, size = 0x4, scoped, tag = 'scoped memory for double_conv_forward_nchw.1']
    %9 = vsyncpa [#allocation5], 0
    // Predicated region
    $region2: #{double_conv_forward_nchw.1} parent=1 // pred_check
      _
    $region3: #{double_conv_forward_nchw.1} parent=1 // pred_check_branch
      %11 = sbr.rel (0) target = $region5
    $region4: #{double_conv_forward_nchw.1} parent=1 // pred_region
      _
    $region5: #{double_conv_forward_nchw.1} parent=1 // pred_fallthru
      _
    // Predicated region
    $region6: #{double_conv_forward_nchw.1} parent=1 // pred_check
      _
    $region7: #{double_conv_forward_nchw.1} parent=1 // pred_check_branch
      %13 = sbr.rel (0) target = $region9
    $region8: #{double_conv_forward_nchw.1} parent=1 // pred_region
      %s15 = ssub.s32 3072, 3072
      %16 = vsyncadd [#allocation5], %s15
      %s17 = sshll.u32 [#allocation4], 4
      %s18 = int_to_ptr.vmem [resolvable:$true] %s17
      %23 = dma.hbm_to_vmem [thread:$0]  %s1, 3072, %s18, [#allocation5], 128, 128, 8
    $region9: #{double_conv_forward_nchw.1} parent=1 // pred_fallthru
      _
    // Predicated region
    $region10: #{double_conv_forward_nchw.1} parent=1 // pred_check
      _
    $region11: #{double_conv_forward_nchw.1} parent=1 // pred_check_branch
      %25 = sbr.rel (0) target = $region13
    $region12: #{double_conv_forward_nchw.1} parent=1 // pred_region
      _
    $region13: #{double_conv_forward_nchw.1} parent=1 // pred_fallthru
      _
    // Predicated region
    $region14: #{double_conv_forward_nchw.1} parent=1 // pred_check
      _
    $region15: #{double_conv_forward_nchw.1} parent=1 // pred_check_branch
      %27 = sbr.rel (0) target = $region17
    $region16: #{double_conv_forward_nchw.1} parent=1 // pred_region
      _
    $region17: #{double_conv_forward_nchw.1} parent=1 // pred_fallthru
      _
    // Predicated region
    $region18: #{double_conv_forward_nchw.1} parent=1 // pred_check
      _
    $region19: #{double_conv_forward_nchw.1} parent=1 // pred_check_branch
      %29 = sbr.rel (0) target = $region21
    $region20: #{double_conv_forward_nchw.1} parent=1 // pred_region
      %30 = dma.done [#allocation5], 3072
    $region21: #{double_conv_forward_nchw.1} parent=1 // pred_fallthru
      _
    %vm31 = vcmask 516096
    %32 = vst.msk [vmem:[#allocation2] sm:$0x1] %vm31, 0.0
    %33 = vst.msk [vmem:[#allocation2 + $0x23] sm:$0x1] %vm31, 0.0
    %vm34 = vcmask 517120
    %35 = vst.msk [vmem:[#allocation2 + $0x11] sm:$0x3] %vm34, 0.0
    %v36 = vld [vmem:[%s0] sm:$0xff]
    %v37 = vld [vmem:[%s0 + $0x8] sm:$0xff]
    %vm38 = vcmask 523264
    %39 = vst.msk [vmem:[#allocation2 + $0x1] sm:$0xff] %vm38, %v36
    %40 = vst.msk [vmem:[#allocation2 + $0x9] sm:$0xff] %vm38, %v37
    %s41 = scalar_lea.vmem %s0, 16
    %v42 = vld [vmem:[%s41] sm:$0xff]
    %v43 = vld [vmem:[%s41 + $0x8] sm:$0xff]
    %44 = vst.msk [vmem:[#allocation2 + $0x13] sm:$0xff] %vm38, %v42
    %45 = vst.msk [vmem:[#allocation2 + $0x1b] sm:$0xff] %vm38, %v43
    %v46 = vld [vmem:[#allocation2] sm:$0xff]
    %v47 = vld [vmem:[#allocation2 + $0x8] sm:$0xff]
    %v48 = vld [vmem:[#allocation2 + $0x10] sm:$0xff]
    %v49 = vld [vmem:[#allocation2 + $0x18] sm:$0xff]
    %v50 = vld [vmem:[#allocation2 + $0x20] sm:$0x3]
    %v51 = vld [vmem:[#allocation4] sm:$0xff]
    %v52 = vld [vmem:[#allocation4 + $0x8] sm:$0xff]
    %v53 = vld [vmem:[#allocation4 + $0x10] sm:$0xff]
    %v54 = vld [vmem:[#allocation4 + $0x18] sm:$0xff]
    %v55 = vld [vmem:[#allocation4 + $0x20] sm:$0xff]
    %v56 = vld [vmem:[#allocation4 + $0x28] sm:$0xff]
    %v57 = vld [vmem:[#allocation4 + $0x30] sm:$0xff]
    %v58 = vld [vmem:[#allocation4 + $0x38] sm:$0xff]
    %v59 = vld [vmem:[#allocation2 + $0x1] sm:$0xff]
    %v60 = vld [vmem:[#allocation2 + $0x9] sm:$0xff]
    %v61 = vld [vmem:[#allocation2 + $0x11] sm:$0xff]
    %v62 = vld [vmem:[#allocation2 + $0x19] sm:$0xff]
    %v63 = vld [vmem:[#allocation2 + $0x21] sm:$0x3]
    %s64 = scalar_lea.vmem [#allocation4], 64
    %v65 = vld [vmem:[%s64] sm:$0xff]
    %v66 = vld [vmem:[%s64 + $0x8] sm:$0xff]
    %v67 = vld [vmem:[%s64 + $0x10] sm:$0xff]
    %v68 = vld [vmem:[%s64 + $0x18] sm:$0xff]
    %v69 = vld [vmem:[%s64 + $0x20] sm:$0xff]
    %v70 = vld [vmem:[%s64 + $0x28] sm:$0xff]
    %v71 = vld [vmem:[%s64 + $0x30] sm:$0xff]
    %v72 = vld [vmem:[%s64 + $0x38] sm:$0xff]
    %v74 = vsel %vm38, %v59, 0
    %v77 = vsel %vm38, %v60, 0
    %v80 = vsel %vm38, %v61, 0
    %v83 = vsel %vm38, %v62, 0
    %v86 = vsel %vm38, %v63, 0
    %88 = vmatprep.subr.mxu0 0.0
    %89 = vmatpush1.msra.mxu0 %v65
    %90 = vmatprep.subr.mxu0 0.0
    %91 = vmatpush1.msra.mxu0 %v66
    %92 = vmatprep.subr.mxu0 0.0
    %93 = vmatpush1.msra.mxu0 %v67
    %94 = vmatprep.subr.mxu0 0.0
    %95 = vmatpush1.msra.mxu0 %v68
    %96 = vmatprep.subr.mxu0 0.0
    %97 = vmatpush1.msra.mxu0 %v69
    %98 = vmatprep.subr.mxu0 0.0
    %99 = vmatpush1.msra.mxu0 %v70
    %100 = vmatprep.subr.mxu0 0.0
    %101 = vmatpush1.msra.mxu0 %v71
    %102 = vmatprep.subr.mxu0 0.0
    %103 = vmatpush1.msra.mxu0 %v72
    %104 = vmatprep.subr.mxu0 0.0
    %105 = vmatpush1.msra.mxu0 0.0
    %106 = vmatprep.subr.mxu0 0.0
    %107 = vmatpush1.msra.mxu0 0.0
    %108 = vmatprep.subr.mxu0 0.0
    %109 = vmatpush1.msra.mxu0 0.0
    %110 = vmatprep.subr.mxu0 0.0
    %111 = vmatpush1.msra.mxu0 0.0
    %112 = vmatprep.subr.mxu0 0.0
    %113 = vmatpush1.msra.mxu0 0.0
    %114 = vmatprep.subr.mxu0 0.0
    %115 = vmatpush1.msra.mxu0 0.0
    %116 = vmatprep.subr.mxu0 0.0
    %117 = vmatpush1.msra.mxu0 0.0
    %118 = vmatprep.subr.mxu0 0.0
    %119 = vmatpush1.msra.mxu0 0.0
    %120 = vmatprep.subr.mxu0 0.0
    %121 = vmatpush1.msra.mxu0 0.0
    %122 = vmatprep.subr.mxu0 0.0
    %123 = vmatpush1.msra.mxu0 0.0
    %124 = vmatprep.subr.mxu0 0.0
    %125 = vmatpush1.msra.mxu0 0.0
    %126 = vmatprep.subr.mxu0 0.0
    %127 = vmatpush1.msra.mxu0 0.0
    %128 = vmatprep.subr.mxu0 0.0
    %129 = vmatpush1.msra.mxu0 0.0
    %130 = vmatprep.subr.mxu0 0.0
    %131 = vmatpush1.msra.mxu0 0.0
    %132 = vmatprep.subr.mxu0 0.0
    %133 = vmatpush1.msra.mxu0 0.0
    %134 = vmatprep.subr.mxu0 0.0
    %135 = vmatpush1.msra.mxu0 0.0
    %136 = vmatprep.subr.mxu0 0.0
    %137 = vmatpush1.msra.mxu0 0.0
    %138 = vmatprep.subr.mxu0 0.0
    %139 = vmatpush1.msra.mxu0 0.0
    %140 = vmatprep.subr.mxu0 0.0
    %141 = vmatpush1.msra.mxu0 0.0
    %142 = vmatprep.subr.mxu0 0.0
    %143 = vmatpush1.msra.mxu0 0.0
    %144 = vmatprep.subr.mxu0 0.0
    %145 = vmatpush1.msra.mxu0 0.0
    %146 = vmatprep.subr.mxu0 0.0
    %147 = vmatpush1.msra.mxu0 0.0
    %148 = vmatprep.subr.mxu0 0.0
    %149 = vmatpush1.msra.mxu0 0.0
    %150 = vmatprep.subr.mxu0 0.0
    %151 = vmatpush1.msra.mxu0 0.0
    %152 = vmatprep.mubr.f32.mxu0 0.0
    %153 = vmatmul.mubr.f32.gmra.mrb[0].mxu0 %v74
    %v154 = vpop.f32.mrb[0].mxu0
    %v155 = vadd.f32 0.0, %v154
    %v156 = vpop.f32.mrb[0].mxu0
    %157 = vmatprep.mubr.f32.mxu0 0.0
    %158 = vmatmul.mubr.f32.gmra.mrb[0].mxu0 %v77
    %v159 = vpop.f32.mrb[0].mxu0
    %v160 = vadd.f32 0.0, %v159
    %v161 = vpop.f32.mrb[0].mxu0
    %162 = vmatprep.mubr.f32.mxu0 0.0
    %163 = vmatmul.mubr.f32.gmra.mrb[0].mxu0 %v80
    %v164 = vpop.f32.mrb[0].mxu0
    %v165 = vadd.f32 0.0, %v164
    %v166 = vpop.f32.mrb[0].mxu0
    %167 = vmatprep.mubr.f32.mxu0 0.0
    %168 = vmatmul.mubr.f32.gmra.mrb[0].mxu0 %v83
    %v169 = vpop.f32.mrb[0].mxu0
    %v170 = vadd.f32 0.0, %v169
    %v171 = vpop.f32.mrb[0].mxu0
    %172 = vmatprep.mubr.f32.mxu0 0.0
    %173 = vmatmul.mubr.f32.gmra.mrb[0].mxu0 %v86
    %v174 = vpop.f32.mrb[0].mxu0
    %v175 = vadd.f32 0.0, %v174
    %v176 = vpop.f32.mrb[0].mxu0
    %177 = vdwg.mxu0
    %v179 = vsel %vm38, %v46, 0
    %v182 = vsel %vm38, %v47, 0
    %v185 = vsel %vm38, %v48, 0
    %v188 = vsel %vm38, %v49, 0
    %v191 = vsel %vm38, %v50, 0
    %193 = vmatprep.subr.mxu0 0.0
    %194 = vmatpush1.msra.mxu0 %v51
    %195 = vmatprep.subr.mxu0 0.0
    %196 = vmatpush1.msra.mxu0 %v52
    %197 = vmatprep.subr.mxu0 0.0
    %198 = vmatpush1.msra.mxu0 %v53
    %199 = vmatprep.subr.mxu0 0.0
    %200 = vmatpush1.msra.mxu0 %v54
    %201 = vmatprep.subr.mxu0 0.0
    %202 = vmatpush1.msra.mxu0 %v55
    %203 = vmatprep.subr.mxu0 0.0
    %204 = vmatpush1.msra.mxu0 %v56
    %205 = vmatprep.subr.mxu0 0.0
    %206 = vmatpush1.msra.mxu0 %v57
    %207 = vmatprep.subr.mxu0 0.0
    %208 = vmatpush1.msra.mxu0 %v58
    %209 = vmatprep.subr.mxu0 0.0
    %210 = vmatpush1.msra.mxu0 0.0
    %211 = vmatprep.subr.mxu0 0.0
    %212 = vmatpush1.msra.mxu0 0.0
    %213 = vmatprep.subr.mxu0 0.0
    %214 = vmatpush1.msra.mxu0 0.0
    %215 = vmatprep.subr.mxu0 0.0
    %216 = vmatpush1.msra.mxu0 0.0
    %217 = vmatprep.subr.mxu0 0.0
    %218 = vmatpush1.msra.mxu0 0.0
    %219 = vmatprep.subr.mxu0 0.0
    %220 = vmatpush1.msra.mxu0 0.0
    %221 = vmatprep.subr.mxu0 0.0
    %222 = vmatpush1.msra.mxu0 0.0
    %223 = vmatprep.subr.mxu0 0.0
    %224 = vmatpush1.msra.mxu0 0.0
    %225 = vmatprep.subr.mxu0 0.0
    %226 = vmatpush1.msra.mxu0 0.0
    %227 = vmatprep.subr.mxu0 0.0
    %228 = vmatpush1.msra.mxu0 0.0
    %229 = vmatprep.subr.mxu0 0.0
    %230 = vmatpush1.msra.mxu0 0.0
    %231 = vmatprep.subr.mxu0 0.0
    %232 = vmatpush1.msra.mxu0 0.0
    %233 = vmatprep.subr.mxu0 0.0
    %234 = vmatpush1.msra.mxu0 0.0
    %235 = vmatprep.subr.mxu0 0.0
    %236 = vmatpush1.msra.mxu0 0.0
    %237 = vmatprep.subr.mxu0 0.0
    %238 = vmatpush1.msra.mxu0 0.0
    %239 = vmatprep.subr.mxu0 0.0
    %240 = vmatpush1.msra.mxu0 0.0
    %241 = vmatprep.subr.mxu0 0.0
    %242 = vmatpush1.msra.mxu0 0.0
    %243 = vmatprep.subr.mxu0 0.0
    %244 = vmatpush1.msra.mxu0 0.0
    %245 = vmatprep.subr.mxu0 0.0
    %246 = vmatpush1.msra.mxu0 0.0
    %247 = vmatprep.subr.mxu0 0.0
    %248 = vmatpush1.msra.mxu0 0.0
    %249 = vmatprep.subr.mxu0 0.0
    %250 = vmatpush1.msra.mxu0 0.0
    %251 = vmatprep.subr.mxu0 0.0
    %252 = vmatpush1.msra.mxu0 0.0
    %253 = vmatprep.subr.mxu0 0.0
    %254 = vmatpush1.msra.mxu0 0.0
    %255 = vmatprep.subr.mxu0 0.0
    %256 = vmatpush1.msra.mxu0 0.0
    %257 = vmatprep.mubr.f32.mxu0 0.0
    %258 = vmatmul.mubr.f32.gmra.mrb[0].mxu0 %v179
    %v259 = vpop.f32.mrb[0].mxu0
    %v260 = vadd.f32 %v155, %v259
    %v261 = vpop.f32.mrb[0].mxu0
    %262 = vmatprep.mubr.f32.mxu0 0.0
    %263 = vmatmul.mubr.f32.gmra.mrb[0].mxu0 %v182
    %v264 = vpop.f32.mrb[0].mxu0
    %v265 = vadd.f32 %v160, %v264
    %v266 = vpop.f32.mrb[0].mxu0
    %267 = vmatprep.mubr.f32.mxu0 0.0
    %268 = vmatmul.mubr.f32.gmra.mrb[0].mxu0 %v185
    %v269 = vpop.f32.mrb[0].mxu0
    %v270 = vadd.f32 %v165, %v269
    %v271 = vpop.f32.mrb[0].mxu0
    %272 = vmatprep.mubr.f32.mxu0 0.0
    %273 = vmatmul.mubr.f32.gmra.mrb[0].mxu0 %v188
    %v274 = vpop.f32.mrb[0].mxu0
    %v275 = vadd.f32 %v170, %v274
    %v276 = vpop.f32.mrb[0].mxu0
    %277 = vmatprep.mubr.f32.mxu0 0.0
    %278 = vmatmul.mubr.f32.gmra.mrb[0].mxu0 %v191
    %v279 = vpop.f32.mrb[0].mxu0
    %v280 = vadd.f32 %v175, %v279
    %v281 = vpop.f32.mrb[0].mxu0
    %282 = vdwg.mxu0
    %v283 = vld [vmem:[#allocation2 + $0x2] sm:$0xff]
    %v284 = vld [vmem:[#allocation2 + $0xa] sm:$0xff]
    %v285 = vld [vmem:[#allocation2 + $0x12] sm:$0xff]
    %v286 = vld [vmem:[#allocation2 + $0x1a] sm:$0xff]
    %v287 = vld [vmem:[#allocation2 + $0x22] sm:$0x3]
    %s288 = scalar_lea.vmem [#allocation4], 128
    %v289 = vld [vmem:[%s288] sm:$0xff]
    %v290 = vld [vmem:[%s288 + $0x8] sm:$0xff]
    %v291 = vld [vmem:[%s288 + $0x10] sm:$0xff]
    %v292 = vld [vmem:[%s288 + $0x18] sm:$0xff]
    %v293 = vld [vmem:[%s288 + $0x20] sm:$0xff]
    %v294 = vld [vmem:[%s288 + $0x28] sm:$0xff]
    %v295 = vld [vmem:[%s288 + $0x30] sm:$0xff]
    %v296 = vld [vmem:[%s288 + $0x38] sm:$0xff]
    %v298 = vsel %vm38, %v283, 0
    %v301 = vsel %vm38, %v284, 0
    %v304 = vsel %vm38, %v285, 0
    %v307 = vsel %vm38, %v286, 0
    %v310 = vsel %vm38, %v287, 0
    %312 = vmatprep.subr.mxu0 0.0
    %313 = vmatpush1.msra.mxu0 %v289
    %314 = vmatprep.subr.mxu0 0.0
    %315 = vmatpush1.msra.mxu0 %v290
    %316 = vmatprep.subr.mxu0 0.0
    %317 = vmatpush1.msra.mxu0 %v291
    %318 = vmatprep.subr.mxu0 0.0
    %319 = vmatpush1.msra.mxu0 %v292
    %320 = vmatprep.subr.mxu0 0.0
    %321 = vmatpush1.msra.mxu0 %v293
    %322 = vmatprep.subr.mxu0 0.0
    %323 = vmatpush1.msra.mxu0 %v294
    %324 = vmatprep.subr.mxu0 0.0
    %325 = vmatpush1.msra.mxu0 %v295
    %326 = vmatprep.subr.mxu0 0.0
    %327 = vmatpush1.msra.mxu0 %v296
    %328 = vmatprep.subr.mxu0 0.0
    %329 = vmatpush1.msra.mxu0 0.0
    %330 = vmatprep.subr.mxu0 0.0
    %331 = vmatpush1.msra.mxu0 0.0
    %332 = vmatprep.subr.mxu0 0.0
    %333 = vmatpush1.msra.mxu0 0.0
    %334 = vmatprep.subr.mxu0 0.0
    %335 = vmatpush1.msra.mxu0 0.0
    %336 = vmatprep.subr.mxu0 0.0
    %337 = vmatpush1.msra.mxu0 0.0
    %338 = vmatprep.subr.mxu0 0.0
    %339 = vmatpush1.msra.mxu0 0.0
    %340 = vmatprep.subr.mxu0 0.0
    %341 = vmatpush1.msra.mxu0 0.0
    %342 = vmatprep.subr.mxu0 0.0
    %343 = vmatpush1.msra.mxu0 0.0
    %344 = vmatprep.subr.mxu0 0.0
    %345 = vmatpush1.msra.mxu0 0.0
    %346 = vmatprep.subr.mxu0 0.0
    %347 = vmatpush1.msra.mxu0 0.0
    %348 = vmatprep.subr.mxu0 0.0
    %349 = vmatpush1.msra.mxu0 0.0
    %350 = vmatprep.subr.mxu0 0.0
    %351 = vmatpush1.msra.mxu0 0.0
    %352 = vmatprep.subr.mxu0 0.0
    %353 = vmatpush1.msra.mxu0 0.0
    %354 = vmatprep.subr.mxu0 0.0
    %355 = vmatpush1.msra.mxu0 0.0
    %356 = vmatprep.subr.mxu0 0.0
    %357 = vmatpush1.msra.mxu0 0.0
    %358 = vmatprep.subr.mxu0 0.0
    %359 = vmatpush1.msra.mxu0 0.0
    %360 = vmatprep.subr.mxu0 0.0
    %361 = vmatpush1.msra.mxu0 0.0
    %362 = vmatprep.subr.mxu0 0.0
    %363 = vmatpush1.msra.mxu0 0.0
    %364 = vmatprep.subr.mxu0 0.0
    %365 = vmatpush1.msra.mxu0 0.0
    %366 = vmatprep.subr.mxu0 0.0
    %367 = vmatpush1.msra.mxu0 0.0
    %368 = vmatprep.subr.mxu0 0.0
    %369 = vmatpush1.msra.mxu0 0.0
    %370 = vmatprep.subr.mxu0 0.0
    %371 = vmatpush1.msra.mxu0 0.0
    %372 = vmatprep.subr.mxu0 0.0
    %373 = vmatpush1.msra.mxu0 0.0
    %374 = vmatprep.subr.mxu0 0.0
    %375 = vmatpush1.msra.mxu0 0.0
    %376 = vmatprep.mubr.f32.mxu0 0.0
    %377 = vmatmul.mubr.f32.gmra.mrb[0].mxu0 %v298
    %v378 = vpop.f32.mrb[0].mxu0
    %v379 = vadd.f32 0.0, %v378
    %v380 = vpop.f32.mrb[0].mxu0
    %381 = vmatprep.mubr.f32.mxu0 0.0
    %382 = vmatmul.mubr.f32.gmra.mrb[0].mxu0 %v301
    %v383 = vpop.f32.mrb[0].mxu0
    %v384 = vadd.f32 0.0, %v383
    %v385 = vpop.f32.mrb[0].mxu0
    %386 = vmatprep.mubr.f32.mxu0 0.0
    %387 = vmatmul.mubr.f32.gmra.mrb[0].mxu0 %v304
    %v388 = vpop.f32.mrb[0].mxu0
    %v389 = vadd.f32 0.0, %v388
    %v390 = vpop.f32.mrb[0].mxu0
    %391 = vmatprep.mubr.f32.mxu0 0.0
    %392 = vmatmul.mubr.f32.gmra.mrb[0].mxu0 %v307
    %v393 = vpop.f32.mrb[0].mxu0
    %v394 = vadd.f32 0.0, %v393
    %v395 = vpop.f32.mrb[0].mxu0
    %396 = vmatprep.mubr.f32.mxu0 0.0
    %397 = vmatmul.mubr.f32.gmra.mrb[0].mxu0 %v310
    %v398 = vpop.f32.mrb[0].mxu0
    %v399 = vadd.f32 0.0, %v398
    %v400 = vpop.f32.mrb[0].mxu0
    %401 = vdwg.mxu0
    %v402 = vadd.f32 %v260, %v379
    %v403 = vadd.f32 %v265, %v384
    %v404 = vadd.f32 %v270, %v389
    %v405 = vadd.f32 %v275, %v394
    %v406 = vadd.f32 %v280, %v399
    %v407 = vld [vmem:[%s3] sm:$0x1]
    %v408 = vlaneseq
    %v409 = vshrl.u32 %v408, 7
    %v410 = vsub.s32 0, %v409
    %v411 = vrot.slane %v407, %v410
    %v412 = vmul.f32 %v402, %v411
    %v413 = vmul.f32 %v403, %v411
    %v414 = vmul.f32 %v404, %v411
    %v415 = vmul.f32 %v405, %v411
    %v416 = vmul.f32 %v406, %v411
    %v417 = vld [vmem:[%s3 + $0x1] sm:$0x1]
    %v418 = vlaneseq
    %v419 = vshrl.u32 %v418, 7
    %v420 = vsub.s32 0, %v419
    %v421 = vrot.slane %v417, %v420
    %v422 = vadd.f32 %v412, %v421
    %v423 = vadd.f32 %v413, %v421
    %v424 = vadd.f32 %v414, %v421
    %v425 = vadd.f32 %v415, %v421
    %v426 = vadd.f32 %v416, %v421
    %v427 = vmax.f32 %v422, 0.0
    %v428 = vmax.f32 %v423, 0.0
    %v429 = vmax.f32 %v424, 0.0
    %v430 = vmax.f32 %v425, 0.0
    %v431 = vmax.f32 %v426, 0.0
    %432 = vst [vmem:[#allocation3] sm:$0x1] 0.0
    %433 = vst [vmem:[#allocation3 + $0x23] sm:$0x1] 0.0
    %434 = vst [vmem:[#allocation3 + $0x11] sm:$0x3] 0.0
    %435 = vst [vmem:[#allocation3 + $0x1] sm:$0xff] %v427
    %436 = vst [vmem:[#allocation3 + $0x9] sm:$0xff] %v428
    %437 = vst [vmem:[#allocation3 + $0x11] sm:$0xfc] %v429
    %438 = vst [vmem:[#allocation3 + $0x19] sm:$0xff] %v430
    %439 = vst [vmem:[#allocation3 + $0x21] sm:$0x3] %v431
    %v440 = vld [vmem:[#allocation3] sm:$0xff]
    %v441 = vld [vmem:[#allocation3 + $0x8] sm:$0xff]
    %v442 = vld [vmem:[#allocation3 + $0x10] sm:$0xff]
    %v443 = vld [vmem:[#allocation3 + $0x18] sm:$0xff]
    %v444 = vld [vmem:[#allocation3 + $0x20] sm:$0x3]
    %v445 = vld [vmem:[%s2] sm:$0xff]
    %v446 = vld [vmem:[%s2 + $0x8] sm:$0xff]
    %v447 = vld [vmem:[%s2 + $0x10] sm:$0xff]
    %v448 = vld [vmem:[%s2 + $0x18] sm:$0xff]
    %v449 = vld [vmem:[%s2 + $0x20] sm:$0xff]
    %v450 = vld [vmem:[%s2 + $0x28] sm:$0xff]
    %v451 = vld [vmem:[%s2 + $0x30] sm:$0xff]
    %v452 = vld [vmem:[%s2 + $0x38] sm:$0xff]
    %v453 = vld [vmem:[%s2 + $0x40] sm:$0xff]
    %v454 = vld [vmem:[%s2 + $0x48] sm:$0xff]
    %v455 = vld [vmem:[%s2 + $0x50] sm:$0xff]
    %v456 = vld [vmem:[%s2 + $0x58] sm:$0xff]
    %v457 = vld [vmem:[%s2 + $0x60] sm:$0xff]
    %v458 = vld [vmem:[%s2 + $0x68] sm:$0xff]
    %v459 = vld [vmem:[%s2 + $0x70] sm:$0xff]
    %v460 = vld [vmem:[%s2 + $0x78] sm:$0xff]
    %v461 = vld [vmem:[#allocation3 + $0x1] sm:$0xff]
    %v462 = vld [vmem:[#allocation3 + $0x9] sm:$0xff]
    %v463 = vld [vmem:[#allocation3 + $0x11] sm:$0xff]
    %v464 = vld [vmem:[#allocation3 + $0x19] sm:$0xff]
    %v465 = vld [vmem:[#allocation3 + $0x21] sm:$0x3]
    %s466 = scalar_lea.vmem %s2, 128
    %v467 = vld [vmem:[%s466] sm:$0xff]
    %v468 = vld [vmem:[%s466 + $0x8] sm:$0xff]
    %v469 = vld [vmem:[%s466 + $0x10] sm:$0xff]
    %v470 = vld [vmem:[%s466 + $0x18] sm:$0xff]
    %v471 = vld [vmem:[%s466 + $0x20] sm:$0xff]
    %v472 = vld [vmem:[%s466 + $0x28] sm:$0xff]
    %v473 = vld [vmem:[%s466 + $0x30] sm:$0xff]
    %v474 = vld [vmem:[%s466 + $0x38] sm:$0xff]
    %v475 = vld [vmem:[%s466 + $0x40] sm:$0xff]
    %v476 = vld [vmem:[%s466 + $0x48] sm:$0xff]
    %v477 = vld [vmem:[%s466 + $0x50] sm:$0xff]
    %v478 = vld [vmem:[%s466 + $0x58] sm:$0xff]
    %v479 = vld [vmem:[%s466 + $0x60] sm:$0xff]
    %v480 = vld [vmem:[%s466 + $0x68] sm:$0xff]
    %v481 = vld [vmem:[%s466 + $0x70] sm:$0xff]
    %v482 = vld [vmem:[%s466 + $0x78] sm:$0xff]
    %483 = vmatprep.subr.mxu0 0.0
    %484 = vmatpush1.msra.mxu0 %v467
    %485 = vmatprep.subr.mxu0 0.0
    %486 = vmatpush1.msra.mxu0 %v468
    %487 = vmatprep.subr.mxu0 0.0
    %488 = vmatpush1.msra.mxu0 %v469
    %489 = vmatprep.subr.mxu0 0.0
    %490 = vmatpush1.msra.mxu0 %v470
    %491 = vmatprep.subr.mxu0 0.0
    %492 = vmatpush1.msra.mxu0 %v471
    %493 = vmatprep.subr.mxu0 0.0
    %494 = vmatpush1.msra.mxu0 %v472
    %495 = vmatprep.subr.mxu0 0.0
    %496 = vmatpush1.msra.mxu0 %v473
    %497 = vmatprep.subr.mxu0 0.0
    %498 = vmatpush1.msra.mxu0 %v474
    %499 = vmatprep.subr.mxu0 0.0
    %500 = vmatpush1.msra.mxu0 %v475
    %501 = vmatprep.subr.mxu0 0.0
    %502 = vmatpush1.msra.mxu0 %v476
    %503 = vmatprep.subr.mxu0 0.0
    %504 = vmatpush1.msra.mxu0 %v477
    %505 = vmatprep.subr.mxu0 0.0
    %506 = vmatpush1.msra.mxu0 %v478
    %507 = vmatprep.subr.mxu0 0.0
    %508 = vmatpush1.msra.mxu0 %v479
    %509 = vmatprep.subr.mxu0 0.0
    %510 = vmatpush1.msra.mxu0 %v480
    %511 = vmatprep.subr.mxu0 0.0
    %512 = vmatpush1.msra.mxu0 %v481
    %513 = vmatprep.subr.mxu0 0.0
    %514 = vmatpush1.msra.mxu0 %v482
    %515 = vmatprep.subr.mxu0 0.0
    %516 = vmatpush1.msra.mxu0 0.0
    %517 = vmatprep.subr.mxu0 0.0
    %518 = vmatpush1.msra.mxu0 0.0
    %519 = vmatprep.subr.mxu0 0.0
    %520 = vmatpush1.msra.mxu0 0.0
    %521 = vmatprep.subr.mxu0 0.0
    %522 = vmatpush1.msra.mxu0 0.0
    %523 = vmatprep.subr.mxu0 0.0
    %524 = vmatpush1.msra.mxu0 0.0
    %525 = vmatprep.subr.mxu0 0.0
    %526 = vmatpush1.msra.mxu0 0.0
    %527 = vmatprep.subr.mxu0 0.0
    %528 = vmatpush1.msra.mxu0 0.0
    %529 = vmatprep.subr.mxu0 0.0
    %530 = vmatpush1.msra.mxu0 0.0
    %531 = vmatprep.subr.mxu0 0.0
    %532 = vmatpush1.msra.mxu0 0.0
    %533 = vmatprep.subr.mxu0 0.0
    %534 = vmatpush1.msra.mxu0 0.0
    %535 = vmatprep.subr.mxu0 0.0
    %536 = vmatpush1.msra.mxu0 0.0
    %537 = vmatprep.subr.mxu0 0.0
    %538 = vmatpush1.msra.mxu0 0.0
    %539 = vmatprep.subr.mxu0 0.0
    %540 = vmatpush1.msra.mxu0 0.0
    %541 = vmatprep.subr.mxu0 0.0
    %542 = vmatpush1.msra.mxu0 0.0
    %543 = vmatprep.subr.mxu0 0.0
    %544 = vmatpush1.msra.mxu0 0.0
    %545 = vmatprep.subr.mxu0 0.0
    %546 = vmatpush1.msra.mxu0 0.0
    %547 = vmatprep.mubr.f32.mxu0 0.0
    %548 = vmatmul.mubr.f32.gmra.mrb[0].mxu0 %v461
    %v549 = vpop.f32.mrb[0].mxu0
    %v550 = vadd.f32 0.0, %v549
    %v551 = vpop.f32.mrb[0].mxu0
    %552 = vmatprep.mubr.f32.mxu0 0.0
    %553 = vmatmul.mubr.f32.gmra.mrb[0].mxu0 %v462
    %v554 = vpop.f32.mrb[0].mxu0
    %v555 = vadd.f32 0.0, %v554
    %v556 = vpop.f32.mrb[0].mxu0
    %557 = vmatprep.mubr.f32.mxu0 0.0
    %558 = vmatmul.mubr.f32.gmra.mrb[0].mxu0 %v463
    %v559 = vpop.f32.mrb[0].mxu0
    %v560 = vadd.f32 0.0, %v559
    %v561 = vpop.f32.mrb[0].mxu0
    %562 = vmatprep.mubr.f32.mxu0 0.0
    %563 = vmatmul.mubr.f32.gmra.mrb[0].mxu0 %v464
    %v564 = vpop.f32.mrb[0].mxu0
    %v565 = vadd.f32 0.0, %v564
    %v566 = vpop.f32.mrb[0].mxu0
    %567 = vmatprep.mubr.f32.mxu0 0.0
    %568 = vmatmul.mubr.f32.gmra.mrb[0].mxu0 %v465
    %v569 = vpop.f32.mrb[0].mxu0
    %v570 = vadd.f32 0.0, %v569
    %v571 = vpop.f32.mrb[0].mxu0
    %572 = vdwg.mxu0
    %573 = vmatprep.subr.mxu0 0.0
    %574 = vmatpush1.msra.mxu0 %v445
    %575 = vmatprep.subr.mxu0 0.0
    %576 = vmatpush1.msra.mxu0 %v446
    %577 = vmatprep.subr.mxu0 0.0
    %578 = vmatpush1.msra.mxu0 %v447
    %579 = vmatprep.subr.mxu0 0.0
    %580 = vmatpush1.msra.mxu0 %v448
    %581 = vmatprep.subr.mxu0 0.0
    %582 = vmatpush1.msra.mxu0 %v449
    %583 = vmatprep.subr.mxu0 0.0
    %584 = vmatpush1.msra.mxu0 %v450
    %585 = vmatprep.subr.mxu0 0.0
    %586 = vmatpush1.msra.mxu0 %v451
    %587 = vmatprep.subr.mxu0 0.0
    %588 = vmatpush1.msra.mxu0 %v452
    %589 = vmatprep.subr.mxu0 0.0
    %590 = vmatpush1.msra.mxu0 %v453
    %591 = vmatprep.subr.mxu0 0.0
    %592 = vmatpush1.msra.mxu0 %v454
    %593 = vmatprep.subr.mxu0 0.0
    %594 = vmatpush1.msra.mxu0 %v455
    %595 = vmatprep.subr.mxu0 0.0
    %596 = vmatpush1.msra.mxu0 %v456
    %597 = vmatprep.subr.mxu0 0.0
    %598 = vmatpush1.msra.mxu0 %v457
    %599 = vmatprep.subr.mxu0 0.0
    %600 = vmatpush1.msra.mxu0 %v458
    %601 = vmatprep.subr.mxu0 0.0
    %602 = vmatpush1.msra.mxu0 %v459
    %603 = vmatprep.subr.mxu0 0.0
    %604 = vmatpush1.msra.mxu0 %v460
    %605 = vmatprep.subr.mxu0 0.0
    %606 = vmatpush1.msra.mxu0 0.0
    %607 = vmatprep.subr.mxu0 0.0
    %608 = vmatpush1.msra.mxu0 0.0
    %609 = vmatprep.subr.mxu0 0.0
    %610 = vmatpush1.msra.mxu0 0.0
    %611 = vmatprep.subr.mxu0 0.0
    %612 = vmatpush1.msra.mxu0 0.0
    %613 = vmatprep.subr.mxu0 0.0
    %614 = vmatpush1.msra.mxu0 0.0
    %615 = vmatprep.subr.mxu0 0.0
    %616 = vmatpush1.msra.mxu0 0.0
    %617 = vmatprep.subr.mxu0 0.0
    %618 = vmatpush1.msra.mxu0 0.0
    %619 = vmatprep.subr.mxu0 0.0
    %620 = vmatpush1.msra.mxu0 0.0
    %621 = vmatprep.subr.mxu0 0.0
    %622 = vmatpush1.msra.mxu0 0.0
    %623 = vmatprep.subr.mxu0 0.0
    %624 = vmatpush1.msra.mxu0 0.0
    %625 = vmatprep.subr.mxu0 0.0
    %626 = vmatpush1.msra.mxu0 0.0
    %627 = vmatprep.subr.mxu0 0.0
    %628 = vmatpush1.msra.mxu0 0.0
    %629 = vmatprep.subr.mxu0 0.0
    %630 = vmatpush1.msra.mxu0 0.0
    %631 = vmatprep.subr.mxu0 0.0
    %632 = vmatpush1.msra.mxu0 0.0
    %633 = vmatprep.subr.mxu0 0.0
    %634 = vmatpush1.msra.mxu0 0.0
    %635 = vmatprep.subr.mxu0 0.0
    %636 = vmatpush1.msra.mxu0 0.0
    %637 = vmatprep.mubr.f32.mxu0 0.0
    %638 = vmatmul.mubr.f32.gmra.mrb[0].mxu0 %v440
    %v639 = vpop.f32.mrb[0].mxu0
    %v640 = vadd.f32 %v550, %v639
    %v641 = vpop.f32.mrb[0].mxu0
    %642 = vmatprep.mubr.f32.mxu0 0.0
    %643 = vmatmul.mubr.f32.gmra.mrb[0].mxu0 %v441
    %v644 = vpop.f32.mrb[0].mxu0
    %v645 = vadd.f32 %v555, %v644
    %v646 = vpop.f32.mrb[0].mxu0
    %647 = vmatprep.mubr.f32.mxu0 0.0
    %648 = vmatmul.mubr.f32.gmra.mrb[0].mxu0 %v442
    %v649 = vpop.f32.mrb[0].mxu0
    %v650 = vadd.f32 %v560, %v649
    %v651 = vpop.f32.mrb[0].mxu0
    %652 = vmatprep.mubr.f32.mxu0 0.0
    %653 = vmatmul.mubr.f32.gmra.mrb[0].mxu0 %v443
    %v654 = vpop.f32.mrb[0].mxu0
    %v655 = vadd.f32 %v565, %v654
    %v656 = vpop.f32.mrb[0].mxu0
    %657 = vmatprep.mubr.f32.mxu0 0.0
    %658 = vmatmul.mubr.f32.gmra.mrb[0].mxu0 %v444
    %v659 = vpop.f32.mrb[0].mxu0
    %v660 = vadd.f32 %v570, %v659
    %v661 = vpop.f32.mrb[0].mxu0
    %662 = vdwg.mxu0
    %v663 = vld [vmem:[#allocation3 + $0x2] sm:$0xff]
    %v664 = vld [vmem:[#allocation3 + $0xa] sm:$0xff]
    %v665 = vld [vmem:[#allocation3 + $0x12] sm:$0xff]
    %v666 = vld [vmem:[#allocation3 + $0x1a] sm:$0xff]
    %v667 = vld [vmem:[#allocation3 + $0x22] sm:$0x3]
    %s668 = scalar_lea.vmem %s2, 256
    %v669 = vld [vmem:[%s668] sm:$0xff]
    %v670 = vld [vmem:[%s668 + $0x8] sm:$0xff]
    %v671 = vld [vmem:[%s668 + $0x10] sm:$0xff]
    %v672 = vld [vmem:[%s668 + $0x18] sm:$0xff]
    %v673 = vld [vmem:[%s668 + $0x20] sm:$0xff]
    %v674 = vld [vmem:[%s668 + $0x28] sm:$0xff]
    %v675 = vld [vmem:[%s668 + $0x30] sm:$0xff]
    %v676 = vld [vmem:[%s668 + $0x38] sm:$0xff]
    %v677 = vld [vmem:[%s668 + $0x40] sm:$0xff]
    %v678 = vld [vmem:[%s668 + $0x48] sm:$0xff]
    %v679 = vld [vmem:[%s668 + $0x50] sm:$0xff]
    %v680 = vld [vmem:[%s668 + $0x58] sm:$0xff]
    %v681 = vld [vmem:[%s668 + $0x60] sm:$0xff]
    %v682 = vld [vmem:[%s668 + $0x68] sm:$0xff]
    %v683 = vld [vmem:[%s668 + $0x70] sm:$0xff]
    %v684 = vld [vmem:[%s668 + $0x78] sm:$0xff]
    %685 = vmatprep.subr.mxu0 0.0
    %686 = vmatpush1.msra.mxu0 %v669
    %687 = vmatprep.subr.mxu0 0.0
    %688 = vmatpush1.msra.mxu0 %v670
    %689 = vmatprep.subr.mxu0 0.0
    %690 = vmatpush1.msra.mxu0 %v671
    %691 = vmatprep.subr.mxu0 0.0
    %692 = vmatpush1.msra.mxu0 %v672
    %693 = vmatprep.subr.mxu0 0.0
    %694 = vmatpush1.msra.mxu0 %v673
    %695 = vmatprep.subr.mxu0 0.0
    %696 = vmatpush1.msra.mxu0 %v674
    %697 = vmatprep.subr.mxu0 0.0
    %698 = vmatpush1.msra.mxu0 %v675
    %699 = vmatprep.subr.mxu0 0.0
    %700 = vmatpush1.msra.mxu0 %v676
    %701 = vmatprep.subr.mxu0 0.0
    %702 = vmatpush1.msra.mxu0 %v677
    %703 = vmatprep.subr.mxu0 0.0
    %704 = vmatpush1.msra.mxu0 %v678
    %705 = vmatprep.subr.mxu0 0.0
    %706 = vmatpush1.msra.mxu0 %v679
    %707 = vmatprep.subr.mxu0 0.0
    %708 = vmatpush1.msra.mxu0 %v680
    %709 = vmatprep.subr.mxu0 0.0
    %710 = vmatpush1.msra.mxu0 %v681
    %711 = vmatprep.subr.mxu0 0.0
    %712 = vmatpush1.msra.mxu0 %v682
    %713 = vmatprep.subr.mxu0 0.0
    %714 = vmatpush1.msra.mxu0 %v683
    %715 = vmatprep.subr.mxu0 0.0
    %716 = vmatpush1.msra.mxu0 %v684
    %717 = vmatprep.subr.mxu0 0.0
    %718 = vmatpush1.msra.mxu0 0.0
    %719 = vmatprep.subr.mxu0 0.0
    %720 = vmatpush1.msra.mxu0 0.0
    %721 = vmatprep.subr.mxu0 0.0
    %722 = vmatpush1.msra.mxu0 0.0
    %723 = vmatprep.subr.mxu0 0.0
    %724 = vmatpush1.msra.mxu0 0.0
    %725 = vmatprep.subr.mxu0 0.0
    %726 = vmatpush1.msra.mxu0 0.0
    %727 = vmatprep.subr.mxu0 0.0
    %728 = vmatpush1.msra.mxu0 0.0
    %729 = vmatprep.subr.mxu0 0.0
    %730 = vmatpush1.msra.mxu0 0.0
    %731 = vmatprep.subr.mxu0 0.0
    %732 = vmatpush1.msra.mxu0 0.0
    %733 = vmatprep.subr.mxu0 0.0
    %734 = vmatpush1.msra.mxu0 0.0
    %735 = vmatprep.subr.mxu0 0.0
    %736 = vmatpush1.msra.mxu0 0.0
    %737 = vmatprep.subr.mxu0 0.0
    %738 = vmatpush1.msra.mxu0 0.0
    %739 = vmatprep.subr.mxu0 0.0
    %740 = vmatpush1.msra.mxu0 0.0
    %741 = vmatprep.subr.mxu0 0.0
    %742 = vmatpush1.msra.mxu0 0.0
    %743 = vmatprep.subr.mxu0 0.0
    %744 = vmatpush1.msra.mxu0 0.0
    %745 = vmatprep.subr.mxu0 0.0
    %746 = vmatpush1.msra.mxu0 0.0
    %747 = vmatprep.subr.mxu0 0.0
    %748 = vmatpush1.msra.mxu0 0.0
    %749 = vmatprep.mubr.f32.mxu0 0.0
    %750 = vmatmul.mubr.f32.gmra.mrb[0].mxu0 %v663
    %v751 = vpop.f32.mrb[0].mxu0
    %v752 = vadd.f32 0.0, %v751
    %v753 = vpop.f32.mrb[0].mxu0
    %754 = vmatprep.mubr.f32.mxu0 0.0
    %755 = vmatmul.mubr.f32.gmra.mrb[0].mxu0 %v664
    %v756 = vpop.f32.mrb[0].mxu0
    %v757 = vadd.f32 0.0, %v756
    %v758 = vpop.f32.mrb[0].mxu0
    %759 = vmatprep.mubr.f32.mxu0 0.0
    %760 = vmatmul.mubr.f32.gmra.mrb[0].mxu0 %v665
    %v761 = vpop.f32.mrb[0].mxu0
    %v762 = vadd.f32 0.0, %v761
    %v763 = vpop.f32.mrb[0].mxu0
    %764 = vmatprep.mubr.f32.mxu0 0.0
    %765 = vmatmul.mubr.f32.gmra.mrb[0].mxu0 %v666
    %v766 = vpop.f32.mrb[0].mxu0
    %v767 = vadd.f32 0.0, %v766
    %v768 = vpop.f32.mrb[0].mxu0
    %769 = vmatprep.mubr.f32.mxu0 0.0
    %770 = vmatmul.mubr.f32.gmra.mrb[0].mxu0 %v667
    %v771 = vpop.f32.mrb[0].mxu0
    %v772 = vadd.f32 0.0, %v771
    %v773 = vpop.f32.mrb[0].mxu0
    %774 = vdwg.mxu0
    %v775 = vadd.f32 %v640, %v752
    %v776 = vadd.f32 %v645, %v757
    %v777 = vadd.f32 %v650, %v762
    %v778 = vadd.f32 %v655, %v767
    %v779 = vadd.f32 %v660, %v772
    %v780 = vld [vmem:[%s3 + $0x2] sm:$0x1]
    %v781 = vlaneseq
    %v782 = vshrl.u32 %v781, 7
    %v783 = vsub.s32 0, %v782
    %v784 = vrot.slane %v780, %v783
    %v785 = vmul.f32 %v775, %v784
    %v786 = vmul.f32 %v776, %v784
    %v787 = vmul.f32 %v777, %v784
    %v788 = vmul.f32 %v778, %v784
    %v789 = vmul.f32 %v779, %v784
    %v790 = vld [vmem:[%s3 + $0x3] sm:$0x1]
    %v791 = vlaneseq
    %v792 = vshrl.u32 %v791, 7
    %v793 = vsub.s32 0, %v792
    %v794 = vrot.slane %v790, %v793
    %v795 = vadd.f32 %v785, %v794
    %v796 = vadd.f32 %v786, %v794
    %v797 = vadd.f32 %v787, %v794
    %v798 = vadd.f32 %v788, %v794
    %v799 = vadd.f32 %v789, %v794
    %v800 = vmax.f32 %v795, 0.0
    %v801 = vmax.f32 %v796, 0.0
    %v802 = vmax.f32 %v797, 0.0
    %v803 = vmax.f32 %v798, 0.0
    %v804 = vmax.f32 %v799, 0.0
    %805 = vst [vmem:[%s4] sm:$0xff] %v800
    %806 = vst [vmem:[%s4 + $0x8] sm:$0xff] %v801
    %s807 = scalar_lea.vmem %s4, 16
    %808 = vst [vmem:[%s807 - $0x2] sm:$0xfc] %v802
    %809 = vst [vmem:[%s807 + $0x6] sm:$0xff] %v803
    %810 = vst [vmem:[%s807 + $0xe] sm:$0x3] %v804
    // Predicated region
    $region22: #{double_conv_forward_nchw.1} parent=1 // pred_check
      _
    $region23: #{double_conv_forward_nchw.1} parent=1 // pred_check_branch
      %812 = sbr.rel (0) target = $region25
    $region24: #{double_conv_forward_nchw.1} parent=1 // pred_region
      _
    $region25: #{double_conv_forward_nchw.1} parent=1 // pred_fallthru
      _
    // Predicated region
    $region26: #{double_conv_forward_nchw.1} parent=1 // pred_check
      _
    $region27: #{double_conv_forward_nchw.1} parent=1 // pred_check_branch
      %814 = sbr.rel (0) target = $region29
    $region28: #{double_conv_forward_nchw.1} parent=1 // pred_region
      _
    $region29: #{double_conv_forward_nchw.1} parent=1 // pred_fallthru
      _
    %815 = vsyncpa [#allocation5], 1

</llo_original>
